<compile_context>
chip_gen: v5e
topology: v5e:2x2
jax: 0.10.0
libtpu: 0.0.40
codegen_flags: <defaults>
</compile_context>

<pallas_src>
import functools

import jax
import jax.numpy as jnp
from jax.experimental import pallas as pl
from jax.experimental.pallas import tpu as pltpu


def _rows_per_tile(h, w, max_tile_lanes):
    """Image rows per grid tile.

    Tiles always cover whole image rows (grad-x boundary becomes a lane mask and
    grad-y needs only one carried row), must evenly divide H, and the tile lane
    count (rows * W) should be a multiple of 128 (lane-dense blocks). Falls back
    to one whole-image tile (block == full dim) if no such divisor exists.
    """
    candidates = [r for r in range(1, h + 1)
                  if h % r == 0 and (r * w) % 128 == 0]
    if not candidates:
        return h
    fitting = [r for r in candidates if r * w <= max_tile_lanes]
    return max(fitting) if fitting else min(candidates)


def _smoothing_loss_kernel(pred_ref, tgt_ref, out_ref, carry_ref, *, w):
    t = pl.program_id(1)                       # tile index along flattened H*W
    x = pred_ref[...].astype(jnp.float32)      # (C, TILE) logits, TILE = rows*W
    tgt = tgt_ref[...]                         # (1, TILE) int32 class indices
    c, tile = x.shape

    @pl.when(t == 0)
    def _init():                               # new image: reset accumulator + carry
        out_ref[...] = jnp.zeros_like(out_ref)
        carry_ref[...] = jnp.zeros_like(carry_ref)

    # ---- cross entropy partial: sum over pixels of (logsumexp_C - logit[target]) ----
    m = jnp.max(x, axis=0, keepdims=True)                               # (1, TILE)
    lse = m + jnp.log(jnp.sum(jnp.exp(x - m), axis=0, keepdims=True))   # (1, TILE)
    cls = jax.lax.broadcasted_iota(jnp.int32, (c, tile), 0)
    picked = jnp.sum(jnp.where(cls == tgt, x, 0.0), axis=0, keepdims=True)
    # Note: out-of-range targets yield picked=0 instead of raising like
    # nn.CrossEntropyLoss, and there is no ignore_index (same as before).
    ce_part = jnp.sum(lse - picked)

    # ---- smoothing partial: depthwise 3x3 gradient convs with zero padding ----
    lane = jax.lax.broadcasted_iota(jnp.int32, (c, tile), 1)
    # gx[i, j] = x[i, j] - x[i, j-1], zero outside the image (column 0 of every row).
    left = jnp.where(lane % w == 0, 0.0, pltpu.roll(x, shift=1, axis=1))
    gx = x - left
    # gy[i, j] = x[i, j] - x[i-1, j], zero outside the image (row 0).
    up = pltpu.roll(x, shift=w, axis=1)        # lanes [0, w) now hold this tile's LAST row
    gy_in = jnp.where(lane >= w, x - up, 0.0)          # rows 1.. of this tile
    gy_top = x[:, :w] - carry_ref[...]                 # first row vs previous tile's last row
    g_part = jnp.sum(gx * gx) + jnp.sum(gy_in * gy_in) + jnp.sum(gy_top * gy_top)

    carry_ref[...] = up[:, :w]                 # carry this tile's last row forward

    # ---- accumulate lane-dense partial sums (output block resident over t) ----
    sub = jax.lax.broadcasted_iota(jnp.int32, out_ref.shape, 0)
    out_ref[...] += jnp.where(sub == 0, ce_part, g_part)   # row 0: CE, rows 1..7: grad


def smoothing_loss(pred, target, lambda_value, n_classes, *, max_tile_lanes=4096):
    """pred: (N, C, H, W) float logits; target: (N, H, W) int class indices."""
    n, c, h, w = pred.shape
    assert c == n_classes
    hw = h * w
    rows = _rows_per_tile(h, w, max_tile_lanes)
    tile = rows * w
    num_tiles = hw // tile

    # Lane-dense layout: flatten H*W onto the last (lane) axis.
    pred_r = pred.reshape(n, c, hw)
    tgt_r = target.astype(jnp.int32).reshape(n, 1, hw)

    itemsize = jnp.dtype(pred.dtype).itemsize
    cost = pl.CostEstimate(
        flops=12 * n * c * hw,
        transcendentals=n * hw * (c + 1),
        bytes_accessed=n * c * hw * itemsize + n * hw * 4 + n * 8 * 128 * 4,
    )

    partials = pl.pallas_call(
        functools.partial(_smoothing_loss_kernel, w=w),
        grid=(n, num_tiles),
        in_specs=[
            pl.BlockSpec((None, c, tile), lambda i, t: (i, 0, t)),
            pl.BlockSpec((None, 1, tile), lambda i, t: (i, 0, t)),
        ],
        out_specs=pl.BlockSpec((None, 8, 128), lambda i, t: (i, 0, 0)),
        out_shape=jax.ShapeDtypeStruct((n, 8, 128), jnp.float32),
        scratch_shapes=[pltpu.VMEM((c, w), jnp.float32)],   # previous tile's last row
        compiler_params=pltpu.CompilerParams(
            dimension_semantics=("parallel", "arbitrary")),
        cost_estimate=cost,
    )(pred_r, tgt_r)

    ce_sum = jnp.sum(partials[:, 0, 0])        # sum over N*H*W pixels of per-pixel CE
    grad_sq_sum = jnp.sum(partials[:, 1, 0])   # sum over N*C*H*W of gx^2 + gy^2
    ce = ce_sum / (n * hw)
    penalty = grad_sq_sum / (n * c * hw)
    return ce + lambda_value * penalty


def smoothing_loss_ref(pred, target, lambda_value, n_classes):
    """Pure-JAX reference (same math as the PyTorch module)."""
    logits = pred.transpose(0, 2, 3, 1).reshape(-1, n_classes)
    labels = target.reshape(-1)
    lse = jax.scipy.special.logsumexp(logits, axis=-1)
    ce = jnp.mean(lse - logits[jnp.arange(labels.shape[0]), labels])
    shifted_x = jnp.pad(pred, ((0, 0), (0, 0), (0, 0), (1, 0)))[:, :, :, :-1]
    shifted_y = jnp.pad(pred, ((0, 0), (0, 0), (1, 0), (0, 0)))[:, :, :-1, :]
    gx = pred - shifted_x
    gy = pred - shifted_y
    return ce + lambda_value * jnp.mean(gx * gx + gy * gy)


if __name__ == "__main__":
    N, C, H, W = 2, 4, 16, 16
    lambda_value = 0.5

    key = jax.random.PRNGKey(0)
    k1, k2 = jax.random.split(key)
    pred = jax.random.normal(k1, (N, C, H, W), dtype=jnp.float32)
    target = jax.random.randint(k2, (N, H, W), 0, C, dtype=jnp.int32)

    # max_tile_lanes=128 forces 2 H*W tiles per image on the toy shape so the
    # cross-tile grad-y carry path is exercised.
    loss = smoothing_loss(pred, target, lambda_value, C, max_tile_lanes=128)
    jax.block_until_ready(loss)

    ref = smoothing_loss_ref(pred, target, lambda_value, C)
    assert jnp.allclose(loss, ref, rtol=1e-5, atol=1e-5), (loss, ref)

    print("KERNEL_OK")
</pallas_src>

<mosaic_0001>
module attributes {stable_mosaic.version = 11 : i64} {
  func.func @_smoothing_loss_kernel(%arg0: i32, %arg1: i32, %arg2: memref<1x4x128xf32, #tpu.memory_space<vmem>>, %arg3: memref<1x1x128xi32, #tpu.memory_space<vmem>>, %arg4: memref<1x8x128xf32, #tpu.memory_space<vmem>>, %arg5: memref<4x16xf32, #tpu.memory_space<vmem>>) attributes {dimension_semantics = [#tpu.dimension_semantics<parallel>, #tpu.dimension_semantics<arbitrary>], iteration_bounds = array<i64: 2, 2>, scalar_prefetch = 0 : i64, scratch_operands = 1 : i64, tpu.core_type = #tpu.core_type<tc>, window_params = [{transform_indices = @transform_0, window_bounds = array<i64: 1, 4, 128>}, {transform_indices = @transform_1, window_bounds = array<i64: 1, 1, 128>}, {transform_indices = @transform_2, window_bounds = array<i64: 1, 8, 128>}]} {
    %c0 = arith.constant 0 : index
    %c0_0 = arith.constant 0 : index
    %c0_1 = arith.constant 0 : index
    %0 = vector.load %arg2[%c0, %c0_0, %c0_1] : memref<1x4x128xf32, #tpu.memory_space<vmem>>, vector<1x4x128xf32>
    %1 = vector.shape_cast %0 : vector<1x4x128xf32> to vector<4x128xf32>
    %c0_2 = arith.constant 0 : index
    %c0_3 = arith.constant 0 : index
    %c0_4 = arith.constant 0 : index
    %2 = vector.load %arg3[%c0_2, %c0_3, %c0_4] : memref<1x1x128xi32, #tpu.memory_space<vmem>>, vector<1x1x128xi32>
    %3 = vector.shape_cast %2 : vector<1x1x128xi32> to vector<1x128xi32>
    %c0_i32 = arith.constant 0 : i32
    %4 = arith.cmpi eq, %arg1, %c0_i32 : i32
    %5 = arith.extui %4 : i1 to i32
    %c0_i32_5 = arith.constant 0 : i32
    %6 = arith.cmpi ne, %5, %c0_i32_5 : i32
    scf.if %6 {
      %cst_34 = arith.constant 0.000000e+00 : f32
      %91 = vector.broadcast %cst_34 : f32 to vector<8x128xf32>
      %c0_35 = arith.constant 0 : index
      %c0_36 = arith.constant 0 : index
      %c0_37 = arith.constant 0 : index
      %92 = vector.load %arg4[%c0_35, %c0_36, %c0_37] : memref<1x8x128xf32, #tpu.memory_space<vmem>>, vector<1x8x128xf32>
      %93 = vector.shape_cast %92 : vector<1x8x128xf32> to vector<8x128xf32>
      %94 = vector.shape_cast %91 : vector<8x128xf32> to vector<1x8x128xf32>
      tpu.vector_store %arg4[%c0_35, %c0_36, %c0_37], %94 {strides = array<i32>} : memref<1x8x128xf32, #tpu.memory_space<vmem>>, vector<1x8x128xf32>,
      %cst_38 = arith.constant 0.000000e+00 : f32
      %95 = vector.broadcast %cst_38 : f32 to vector<4x16xf32>
      %c0_39 = arith.constant 0 : index
      %c0_40 = arith.constant 0 : index
      %96 = vector.load %arg5[%c0_39, %c0_40] : memref<4x16xf32, #tpu.memory_space<vmem>>, vector<4x16xf32>
      tpu.vector_store %arg5[%c0_39, %c0_40], %95 {strides = array<i32>} : memref<4x16xf32, #tpu.memory_space<vmem>>, vector<4x16xf32>,
    } else {
    }
    %cst = arith.constant dense<0xFF800000> : vector<128xf32>
    %7 = vector.multi_reduction <maximumf>, %1, %cst [0] : vector<4x128xf32> to vector<128xf32>
    %8 = vector.shape_cast %7 : vector<128xf32> to vector<1x128xf32>
    %9 = vector.broadcast %8 : vector<1x128xf32> to vector<4x128xf32>
    %10 = arith.subf %1, %9 : vector<4x128xf32>
    %11 = math.exp %10 : vector<4x128xf32>
    %cst_6 = arith.constant dense<0.000000e+00> : vector<128xf32>
    %12 = vector.multi_reduction <add>, %11, %cst_6 [0] : vector<4x128xf32> to vector<128xf32>
    %13 = vector.shape_cast %12 : vector<128xf32> to vector<1x128xf32>
    %14 = math.log %13 : vector<1x128xf32>
    %15 = arith.addf %8, %14 : vector<1x128xf32>
    %16 = tpu.iota {dimensions = array<i32: 0>} : vector<4x128xi32>
    %17 = vector.broadcast %3 : vector<1x128xi32> to vector<4x128xi32>
    %18 = arith.cmpi eq, %16, %17 : vector<4x128xi32>
    %cst_7 = arith.constant 0.000000e+00 : f32
    %19 = vector.broadcast %cst_7 : f32 to vector<4x128xf32>
    %20 = arith.select %18, %1, %19 : vector<4x128xi1>, vector<4x128xf32>
    %cst_8 = arith.constant dense<0.000000e+00> : vector<128xf32>
    %21 = vector.multi_reduction <add>, %20, %cst_8 [0] : vector<4x128xf32> to vector<128xf32>
    %22 = vector.shape_cast %21 : vector<128xf32> to vector<1x128xf32>
    %23 = arith.subf %15, %22 : vector<1x128xf32>
    %24 = vector.shape_cast %23 : vector<1x128xf32> to vector<1x1x128xf32>
    %cst_9 = arith.constant dense<0.000000e+00> : vector<1xf32>
    %25 = vector.multi_reduction <add>, %24, %cst_9 [1, 2] : vector<1x1x128xf32> to vector<1xf32>
    %26 = vector.shape_cast %25 : vector<1xf32> to vector<1x1x1xf32>
    %27 = vector.extract %26[0, 0, 0] : f32 from vector<1x1x1xf32>
    %28 = tpu.iota {dimensions = array<i32: 1>} : vector<4x128xi32>
    %c16_i32 = arith.constant 16 : i32
    %c0_i32_10 = arith.constant 0 : i32
    %29 = arith.cmpi eq, %c16_i32, %c0_i32_10 : i32
    %c1_i32 = arith.constant 1 : i32
    %30 = arith.select %29, %c1_i32, %c16_i32 : i32
    %31 = vector.broadcast %30 : i32 to vector<4x128xi32>
    %32 = arith.remsi %28, %31 : vector<4x128xi32>
    %c0_i32_11 = arith.constant 0 : i32
    %33 = vector.broadcast %c0_i32_11 : i32 to vector<4x128xi32>
    %34 = arith.cmpi ne, %32, %33 : vector<4x128xi32>
    %c0_i32_12 = arith.constant 0 : i32
    %35 = vector.broadcast %c0_i32_12 : i32 to vector<4x128xi32>
    %36 = arith.cmpi slt, %32, %35 : vector<4x128xi32>
    %c0_i32_13 = arith.constant 0 : i32
    %37 = arith.cmpi slt, %30, %c0_i32_13 : i32
    %38 = vector.broadcast %37 : i1 to vector<4x128xi1>
    %39 = vector.broadcast %38 : vector<4x128xi1> to vector<4x128xi1>
    %40 = arith.xori %36, %39 : vector<4x128xi1>
    %41 = arith.andi %40, %34 : vector<4x128xi1>
    %42 = vector.broadcast %30 : i32 to vector<4x128xi32>
    %43 = arith.addi %32, %42 : vector<4x128xi32>
    %44 = arith.select %41, %43, %32 : vector<4x128xi1>, vector<4x128xi32>
    %c0_i32_14 = arith.constant 0 : i32
    %45 = vector.broadcast %c0_i32_14 : i32 to vector<4x128xi32>
    %46 = arith.cmpi eq, %44, %45 : vector<4x128xi32>
    %c1_i32_15 = arith.constant 1 : i32
    %47 = tpu.dynamic_rotate %1 by %c1_i32_15 dim 1 : vector<4x128xf32>, i32 -> vector<4x128xf32>
    %cst_16 = arith.constant 0.000000e+00 : f32
    %48 = vector.broadcast %cst_16 : f32 to vector<4x128xf32>
    %49 = arith.select %46, %48, %47 : vector<4x128xi1>, vector<4x128xf32>
    %50 = arith.subf %1, %49 : vector<4x128xf32>
    %c16_i32_17 = arith.constant 16 : i32
    %51 = tpu.dynamic_rotate %1 by %c16_i32_17 dim 1 : vector<4x128xf32>, i32 -> vector<4x128xf32>
    %c16_i32_18 = arith.constant 16 : i32
    %52 = vector.broadcast %c16_i32_18 : i32 to vector<4x128xi32>
    %53 = arith.cmpi sge, %28, %52 : vector<4x128xi32>
    %54 = arith.subf %1, %51 : vector<4x128xf32>
    %cst_19 = arith.constant 0.000000e+00 : f32
    %55 = vector.broadcast %cst_19 : f32 to vector<4x128xf32>
    %56 = arith.select %53, %54, %55 : vector<4x128xi1>, vector<4x128xf32>
    %57 = vector.extract_strided_slice %1 {offsets = [0, 0], sizes = [4, 16], strides = [1, 1]} : vector<4x128xf32> to vector<4x16xf32>
    %c0_20 = arith.constant 0 : index
    %c0_21 = arith.constant 0 : index
    %58 = vector.load %arg5[%c0_20, %c0_21] : memref<4x16xf32, #tpu.memory_space<vmem>>, vector<4x16xf32>
    %59 = arith.subf %57, %58 : vector<4x16xf32>
    %60 = arith.mulf %50, %50 : vector<4x128xf32>
    %61 = vector.shape_cast %60 : vector<4x128xf32> to vector<1x4x128xf32>
    %cst_22 = arith.constant dense<0.000000e+00> : vector<1xf32>
    %62 = vector.multi_reduction <add>, %61, %cst_22 [1, 2] : vector<1x4x128xf32> to vector<1xf32>
    %63 = vector.shape_cast %62 : vector<1xf32> to vector<1x1x1xf32>
    %64 = vector.extract %63[0, 0, 0] : f32 from vector<1x1x1xf32>
    %65 = arith.mulf %56, %56 : vector<4x128xf32>
    %66 = vector.shape_cast %65 : vector<4x128xf32> to vector<1x4x128xf32>
    %cst_23 = arith.constant dense<0.000000e+00> : vector<1xf32>
    %67 = vector.multi_reduction <add>, %66, %cst_23 [1, 2] : vector<1x4x128xf32> to vector<1xf32>
    %68 = vector.shape_cast %67 : vector<1xf32> to vector<1x1x1xf32>
    %69 = vector.extract %68[0, 0, 0] : f32 from vector<1x1x1xf32>
    %70 = arith.addf %64, %69 : f32
    %71 = arith.mulf %59, %59 : vector<4x16xf32>
    %72 = vector.shape_cast %71 : vector<4x16xf32> to vector<1x4x16xf32>
    %cst_24 = arith.constant dense<0.000000e+00> : vector<1xf32>
    %73 = vector.multi_reduction <add>, %72, %cst_24 [1, 2] : vector<1x4x16xf32> to vector<1xf32>
    %74 = vector.shape_cast %73 : vector<1xf32> to vector<1x1x1xf32>
    %75 = vector.extract %74[0, 0, 0] : f32 from vector<1x1x1xf32>
    %76 = arith.addf %70, %75 : f32
    %77 = vector.extract_strided_slice %51 {offsets = [0, 0], sizes = [4, 16], strides = [1, 1]} : vector<4x128xf32> to vector<4x16xf32>
    %c0_25 = arith.constant 0 : index
    %c0_26 = arith.constant 0 : index
    %78 = vector.load %arg5[%c0_25, %c0_26] : memref<4x16xf32, #tpu.memory_space<vmem>>, vector<4x16xf32>
    tpu.vector_store %arg5[%c0_25, %c0_26], %77 {strides = array<i32>} : memref<4x16xf32, #tpu.memory_space<vmem>>, vector<4x16xf32>,
    %79 = tpu.iota {dimensions = array<i32: 0>} : vector<8x128xi32>
    %c0_27 = arith.constant 0 : index
    %c0_28 = arith.constant 0 : index
    %c0_29 = arith.constant 0 : index
    %80 = vector.load %arg4[%c0_27, %c0_28, %c0_29] : memref<1x8x128xf32, #tpu.memory_space<vmem>>, vector<1x8x128xf32>
    %81 = vector.shape_cast %80 : vector<1x8x128xf32> to vector<8x128xf32>
    %c0_i32_30 = arith.constant 0 : i32
    %82 = vector.broadcast %c0_i32_30 : i32 to vector<8x128xi32>
    %83 = arith.cmpi eq, %79, %82 : vector<8x128xi32>
    %84 = vector.broadcast %27 : f32 to vector<8x128xf32>
    %85 = vector.broadcast %76 : f32 to vector<8x128xf32>
    %86 = arith.select %83, %84, %85 : vector<8x128xi1>, vector<8x128xf32>
    %87 = arith.addf %81, %86 : vector<8x128xf32>
    %c0_31 = arith.constant 0 : index
    %c0_32 = arith.constant 0 : index
    %c0_33 = arith.constant 0 : index
    %88 = vector.load %arg4[%c0_31, %c0_32, %c0_33] : memref<1x8x128xf32, #tpu.memory_space<vmem>>, vector<1x8x128xf32>
    %89 = vector.shape_cast %88 : vector<1x8x128xf32> to vector<8x128xf32>
    %90 = vector.shape_cast %87 : vector<8x128xf32> to vector<1x8x128xf32>
    tpu.vector_store %arg4[%c0_31, %c0_32, %c0_33], %90 {strides = array<i32>} : memref<1x8x128xf32, #tpu.memory_space<vmem>>, vector<1x8x128xf32>,
    return
  }
  func.func @transform_0(%arg0: i32, %arg1: i32) -> (i32, i32, i32) {
    %c0_i32 = arith.constant 0 : i32
    %c0_i32_0 = arith.constant 0 : i32
    return %arg0, %c0_i32, %arg1 : i32, i32, i32
  }
  func.func @transform_1(%arg0: i32, %arg1: i32) -> (i32, i32, i32) {
    %c0_i32 = arith.constant 0 : i32
    %c0_i32_0 = arith.constant 0 : i32
    return %arg0, %c0_i32, %arg1 : i32, i32, i32
  }
  func.func @transform_2(%arg0: i32, %arg1: i32) -> (i32, i32, i32) {
    %c0_i32 = arith.constant 0 : i32
    %c0_i32_0 = arith.constant 0 : i32
    %c0_i32_1 = arith.constant 0 : i32
    return %arg0, %c0_i32, %c0_i32_0 : i32, i32, i32
  }
}

</mosaic_0001>

<llo_original>
// kernel: tpu_custom_call.1
$region0: #{tpu_custom_call.1}
  #allocation0 [shape = 'u32[]', space=smem, size = 0x4, offset = 0x4, fixed_abs, tag = 'smem constant byte address 0x4 - core index']
  #allocation1 [shape = 'u32[72,128]{1,0:T(1,128)}', space=vmem, size = 0x9000, scoped, tag = 'internal scratch']
  #allocation2 [shape = 'f32[4,16]{1,0:T(4,128)}', space=vmem, size = 0x800, scoped, tag = 'scratch operand']
  %s0 = inlined_call_operand.hbm [shape: f32[2,4,256], index: 0, kind: input, shape index: {}]
  %s1 = inlined_call_operand.hbm [shape: s32[2,1,256], index: 1, kind: input, shape index: {}]
  %s2 = inlined_call_operand.hbm [shape: f32[2,8,128], index: 2, kind: output, shape index: {}]
  %s3 = sld [smem:[#allocation0]]
  $region53: #{tpu_custom_call.1} parent=0
    _
  %s5 = ssub.s32 1, %s3
  %s6 = scalar_select 0, %s5, %s3
  $region1: #{tpu_custom_call.1} parent=0
    #allocation3 [shape = 'u8[4096]{0}', space=vmem, size = 0x1000, scoped, tag = 'input window, operand 0']
    #allocation4 [shape = 's32[2]{0}', space=sflag, size = 0x8, scoped, tag = 'scoped memory for tpu_custom_call.1']
    #allocation5 [shape = 's32[2]{0}', space=sflag, size = 0x8, scoped, tag = 'scoped memory for tpu_custom_call.1']
    #allocation6 [shape = 'u8[1024]{0}', space=vmem, size = 0x400, scoped, tag = 'input window, operand 1']
    #allocation7 [shape = 's32[2]{0}', space=sflag, size = 0x8, scoped, tag = 'scoped memory for tpu_custom_call.1']
    #allocation8 [shape = 'u8[8192]{0}', space=vmem, size = 0x2000, scoped, tag = 'output window, operand 0']
    %7 = vsyncpa [#allocation4], 0
    %s8 = scalar_lea.sflag [#allocation4], 1
    %9 = vsyncpa %s8, 0
    %10 = vsyncpa [#allocation7], 0
    %s11 = scalar_lea.sflag [#allocation7], 1
    %12 = vsyncpa %s11, 0
    %13 = vsyncpa [#allocation5], 0
    %s14 = scalar_lea.sflag [#allocation5], 1
    %15 = vsyncpa %s14, 0
    loop: start=0, step=1, limit=6
    $region2: #{tpu_custom_call.1} parent=1 // loop_pre_header
      _
    $region3: #{tpu_custom_call.1} parent=1 // loop_header
      %s17 = sphi 0, %s21
      %p18 = scmp.ge.s32.totalorder %s17, 6
      %s24 = sphi 0, %s36
      %s25 = sphi 0, %s32
      %s26 = sphi 0, %s24
      %s27 = sphi 0, %s25
      %s28 = sphi 0, %s26
      %s29 = sphi 0, %s27
      %s41 = sphi 0, %s43
      %s44 = sphi 0, %s41
      %s45 = sphi 0, %s44
      %s61 = sphi 0, %s45
      %s69 = sphi 0, %s71
      %s72 = sphi 0, %s69
      %s73 = sphi 0, %s72
      %s89 = sphi 0, %s73
      %s95 = sphi 0, %s97
      %s98 = sphi 0, %s95
      %s99 = sphi 0, %s98
      %s115 = sphi 0, %s99
    $region4: #{tpu_custom_call.1} parent=1 // loop_header_branch
      %20 = sbr.rel (%p18) target = $region8
    $region5: #{tpu_custom_call.1} parent=1 // loop_body
      %s22 = ssub.s32 %s17, 1
      %s23 = ssub.s32 %s17, 2
      %s30 = sadd.s32 1, %s25
      %p31 = scmp.ge.s32.totalorder %s30, 2
      %s32 = scalar_select %p31, 0, %s30
      %s33 = sadd.s32 1, %s24
      %s34 = scalar_select %p31, %s33, %s24
      %p35 = scmp.ge.s32.totalorder %s34, 2
      %s36 = scalar_select %p35, 0, %s34
      %s37 = ssub.s32 %s24, %s36
      %s38 = ssub.s32 %s25, %s32
      %s39 = sor.u32 %s37, %s38
      %p40 = scmp.eq.s32.totalorder %s39, 0
      %s42 = sadd.s32 %s41, 1
      %s43 = scalar_select %p40, %s41, %s42
      %p46 = pneg %p40
      %p47 = scmp.eq.s32.totalorder %s17, 3
      %p48 = por %p46, %p47
      %p49 = scmp.ne.s32.totalorder %s41, %s44
      %p50 = scmp.eq.s32.totalorder %s17, 0
      %p51 = por %p49, %p50
      %p52 = scmp.ne.s32.totalorder %s41, %s44
      %p53 = scmp.eq.s32.totalorder %s22, 3
      %p54 = por %p52, %p53
      %p55 = scmp.ne.s32.totalorder %s44, %s45
      %p56 = scmp.eq.s32.totalorder %s22, 0
      %p57 = por %p55, %p56
      %p58 = scmp.ne.s32.totalorder %s44, %s45
      %p59 = scmp.eq.s32.totalorder %s23, 3
      %p60 = por %p58, %p59
      %p62 = scmp.ne.s32.totalorder %s45, %s61
      %p63 = scmp.eq.s32.totalorder %s23, 0
      %p64 = por %p62, %p63
      %s65 = ssub.s32 %s24, %s36
      %s66 = ssub.s32 %s25, %s32
      %s67 = sor.u32 %s65, %s66
      %p68 = scmp.eq.s32.totalorder %s67, 0
      %s70 = sadd.s32 %s69, 1
      %s71 = scalar_select %p68, %s69, %s70
      %p74 = pneg %p68
      %p75 = scmp.eq.s32.totalorder %s17, 3
      %p76 = por %p74, %p75
      %p77 = scmp.ne.s32.totalorder %s69, %s72
      %p78 = scmp.eq.s32.totalorder %s17, 0
      %p79 = por %p77, %p78
      %p80 = scmp.ne.s32.totalorder %s69, %s72
      %p81 = scmp.eq.s32.totalorder %s22, 3
      %p82 = por %p80, %p81
      %p83 = scmp.ne.s32.totalorder %s72, %s73
      %p84 = scmp.eq.s32.totalorder %s22, 0
      %p85 = por %p83, %p84
      %p86 = scmp.ne.s32.totalorder %s72, %s73
      %p87 = scmp.eq.s32.totalorder %s23, 3
      %p88 = por %p86, %p87
      %p90 = scmp.ne.s32.totalorder %s73, %s89
      %p91 = scmp.eq.s32.totalorder %s23, 0
      %p92 = por %p90, %p91
      %s93 = ssub.s32 %s24, %s36
      %p94 = scmp.eq.s32.totalorder %s93, 0
      %s96 = sadd.s32 %s95, 1
      %s97 = scalar_select %p94, %s95, %s96
      %p100 = pneg %p94
      %p101 = scmp.eq.s32.totalorder %s17, 3
      %p102 = por %p100, %p101
      %p103 = scmp.ne.s32.totalorder %s95, %s98
      %p104 = scmp.eq.s32.totalorder %s17, 0
      %p105 = por %p103, %p104
      %p106 = scmp.ne.s32.totalorder %s95, %s98
      %p107 = scmp.eq.s32.totalorder %s22, 3
      %p108 = por %p106, %p107
      %p109 = scmp.ne.s32.totalorder %s98, %s99
      %p110 = scmp.eq.s32.totalorder %s22, 0
      %p111 = por %p109, %p110
      %p112 = scmp.ne.s32.totalorder %s98, %s99
      %p113 = scmp.eq.s32.totalorder %s23, 3
      %p114 = por %p112, %p113
      %p116 = scmp.ne.s32.totalorder %s99, %s115
      %p117 = scmp.eq.s32.totalorder %s23, 0
      %p118 = por %p116, %p117
      %p119 = scmp.le.s32.totalorder 1, %s17
      %p120 = scmp.lt.s32.totalorder %s17, 5
      %p121 = pnand %p119, %p120
      %p122 = pneg %p121
      // Predicated region
      $region9: #{tpu_custom_call.1} parent=5 // pred_check
        _
      $region10: #{tpu_custom_call.1} parent=5 // pred_check_branch
        %124 = sbr.rel (%p121) target = $region12
      $region11: #{tpu_custom_call.1} parent=5 // pred_region
        %s125 = ssub.s32 %s17, 1
      $region12: #{tpu_custom_call.1} parent=5 // pred_fallthru
        _
      %p126 = scmp.lt.s32.totalorder %s17, 4
      // Predicated region
      $region13: #{tpu_custom_call.1} parent=5 // pred_check
        %p127 = pneg %p126
      $region14: #{tpu_custom_call.1} parent=5 // pred_check_branch
        %129 = sbr.rel (%p127) target = $region16
      $region15: #{tpu_custom_call.1} parent=5 // pred_region
        // Predicated region
        $region17: #{tpu_custom_call.1} parent=15 // pred_check
          %p130 = pneg %p51
        $region18: #{tpu_custom_call.1} parent=15 // pred_check_branch
          %132 = sbr.rel (%p130) target = $region20
        $region19: #{tpu_custom_call.1} parent=15 // pred_region
          %s133 = sand.u32 %s41, 1
          %s134 = scalar_lea.sflag [#allocation4], %s133
          %s135 = sand.u32 %s41, 1
          %s136 = smul.addr %s135, 4
          %s137 = scalar_lea.vmem [#allocation3], %s136
          %139 = vsyncadd %s134, 0
          %s140 = smul.addr %s24, 2
          %s141 = sadd.s32 %s25, %s140
          %s142 = smul.addr %s141, 4
          %s143 = scalar_lea.hbm %s0, %s142
          %s145 = sshll.u32 %s143, 4
          %s146 = int_to_ptr.hbm [resolvable:$true] %s145
          %s147 = sshll.u32 %s137, 4
          %s148 = int_to_ptr.vmem [resolvable:$true] %s147
          %150 = dma.hbm_to_vmem [thread:$0]  %s146, 64, %s148, %s134
        $region20: #{tpu_custom_call.1} parent=15 // pred_fallthru
          _
        // Predicated region
        $region21: #{tpu_custom_call.1} parent=15 // pred_check
          %p151 = pneg %p79
        $region22: #{tpu_custom_call.1} parent=15 // pred_check_branch
          %153 = sbr.rel (%p151) target = $region24
        $region23: #{tpu_custom_call.1} parent=15 // pred_region
          %s154 = sand.u32 %s69, 1
          %s155 = scalar_lea.sflag [#allocation7], %s154
          %s156 = sand.u32 %s69, 1
          %s157 = scalar_lea.vmem [#allocation6], %s156
          %159 = vsyncadd %s155, 0
          %s160 = smul.addr %s24, 2
          %s161 = sadd.s32 %s25, %s160
          %s162 = scalar_lea.hbm %s1, %s161
          %s164 = sshll.u32 %s162, 4
          %s165 = int_to_ptr.hbm [resolvable:$true] %s164
          %s166 = sshll.u32 %s157, 4
          %s167 = int_to_ptr.vmem [resolvable:$true] %s166
          %169 = dma.hbm_to_vmem [thread:$0]  %s165, 16, %s167, %s155
        $region24: #{tpu_custom_call.1} parent=15 // pred_fallthru
          _
      $region16: #{tpu_custom_call.1} parent=5 // pred_fallthru
        _
      %p170 = scmp.le.s32.totalorder 1, %s17
      %p171 = scmp.lt.s32.totalorder %s17, 5
      %p172 = pnand %p170, %p171
      %p173 = pneg %p172
      // Predicated region
      $region25: #{tpu_custom_call.1} parent=5 // pred_check
        _
      $region26: #{tpu_custom_call.1} parent=5 // pred_check_branch
        %175 = sbr.rel (%p172) target = $region28
      $region27: #{tpu_custom_call.1} parent=5 // pred_region
        %s176 = ssub.s32 %s17, 1
        %s177 = sand.u32 %s44, 1
        %s178 = scalar_lea.sflag [#allocation4], %s177
        %s179 = sand.u32 %s44, 1
        %s180 = smul.addr %s179, 4
        %s181 = scalar_lea.vmem [#allocation3], %s180
        // Predicated region
        $region29: #{tpu_custom_call.1} parent=27 // pred_check
          %p182 = pneg %p57
        $region30: #{tpu_custom_call.1} parent=27 // pred_check_branch
          %184 = sbr.rel (%p182) target = $region32
        $region31: #{tpu_custom_call.1} parent=27 // pred_region
          %186 = dma.done %s178, 64
        $region32: #{tpu_custom_call.1} parent=27 // pred_fallthru
          _
        %s187 = sand.u32 %s72, 1
        %s188 = scalar_lea.sflag [#allocation7], %s187
        %s189 = sand.u32 %s72, 1
        %s190 = scalar_lea.vmem [#allocation6], %s189
        // Predicated region
        $region33: #{tpu_custom_call.1} parent=27 // pred_check
          %p191 = pneg %p85
        $region34: #{tpu_custom_call.1} parent=27 // pred_check_branch
          %193 = sbr.rel (%p191) target = $region36
        $region35: #{tpu_custom_call.1} parent=27 // pred_region
          %195 = dma.done %s188, 16
        $region36: #{tpu_custom_call.1} parent=27 // pred_fallthru
          _
        %s196 = sand.u32 %s44, 1
        %s197 = scalar_lea.sflag [#allocation4], %s196
        %s198 = sand.u32 %s44, 1
        %s199 = smul.addr %s198, 4
        %s200 = scalar_lea.vmem [#allocation3], %s199
        %p201 = pneg %p57
        %p202 = pneg %p54
        %s203 = sand.u32 %s72, 1
        %s204 = scalar_lea.sflag [#allocation7], %s203
        %s205 = sand.u32 %s72, 1
        %s206 = scalar_lea.vmem [#allocation6], %s205
        %p207 = pneg %p85
        %p208 = pneg %p82
        %p209 = pneg %p111
        %p210 = pneg %p108
        %s211 = sand.u32 %s98, 1
        %s212 = scalar_lea.sflag [#allocation5], %s211
        %s213 = sand.u32 %s98, 1
        %s214 = smul.addr %s213, 8
        %s215 = scalar_lea.vmem [#allocation8], %s214
        %v216 = vld [vmem:[%s181] sm:$0xf]
        %v217 = vld [vmem:[%s190] sm:$0x1]
        %p218 = scmp.eq.s32.totalorder %s27, 0
        // Predicated region
        $region37: #{tpu_custom_call.1} parent=27 // pred_check
          %p219 = pneg %p218
        $region38: #{tpu_custom_call.1} parent=27 // pred_check_branch
          %221 = sbr.rel (%p219) target = $region40
        $region39: #{tpu_custom_call.1} parent=27 // pred_region
          %222 = vst [vmem:[%s215] sm:$0xff] 0.0
          %vm223 = vcmask 125952
          %224 = vst.msk [vmem:[#allocation2] sm:$0xf] %vm223, 0.0
        $region40: #{tpu_custom_call.1} parent=27 // pred_fallthru
          _
        %vm225 = vcmask 1043456
        %v226 = vsel %vm225, %v216, -inf
        %v227 = vrot.slane %v226, 4
        %v228 = vmax.f32 %v226, %v227
        %v229 = vrot.slane %v228, 2
        %v230 = vmax.f32 %v228, %v229
        %v231 = vrot.slane %v230, 1
        %v232 = vmax.f32 %v230, %v231
        %v233 = vsub.f32 %v216, %v232
        %v234 = vmul.f32 %v233, 1.442695
        %v235 = vpow.pop %v234
        %v236 = vsel %vm225, %v235, 0.0
        %v237 = vrot.slane %v236, 4
        %v238 = vadd.f32 %v236, %v237
        %v239 = vrot.slane %v238, 2
        %v240 = vadd.f32 %v238, %v239
        %v241 = vrot.slane %v240, 1
        %v242 = vadd.f32 %v240, %v241
        %v243 = vlog2.pop %v242
        %v244 = vmul.f32 %v243, 0.6931472
        %v245 = vadd.f32 %v232, %v244
        %v246 = vlaneseq
        %v247 = vshrl.u32 %v246, 7
        %v248 = vperm.slane %v217, 0
        %vm249 = vcmp.eq.s32.totalorder %v247, %v248
        %v250 = vsel %vm249, %v216, 0.0
        %v251 = vsel %vm225, %v250, 0.0
        %v252 = vrot.slane %v251, 4
        %v253 = vadd.f32 %v251, %v252
        %v254 = vrot.slane %v253, 2
        %v255 = vadd.f32 %v253, %v254
        %v256 = vrot.slane %v255, 1
        %v257 = vadd.f32 %v255, %v256
        %v258 = vsub.f32 %v245, %v257
        %vm259 = vcmask 1040384
        %v260 = vsel %vm259, %v258, 0.0
        %261 = vadd.xlane.f32.xlu0 %v260
        %v262 = vpop.xlane.xlu0 %261
        %v263 = vrot.slane %v262, 4
        %v264 = vadd.f32 %v262, %v263
        %v265 = vrot.slane %v264, 2
        %v266 = vadd.f32 %v264, %v265
        %v267 = vrot.slane %v266, 1
        %v268 = vadd.f32 %v266, %v267
        %s269 = vtos %v268
        %v270 = vlaneseq
        %v271 = vand.u32 %v270, 127
        %vm272 = vcmp.lt.s32.totalorder %v271, 0
        %v273 = vsub.s32 0, %v271
        %v274 = vsel %vm272, %v273, %v271
        %v275 = vshrl.u32 %v274, 4
        %v276 = vand.u32 %v274, 15
        %v277 = vsub.s32 0, %v276
        %v278 = vsel %vm272, %v277, %v276
        %vm279 = vcmp.ne.s32.totalorder %v278, 0
        %vm280 = vcmp.lt.s32.totalorder %v278, 0
        %vm281 = vmand %vm280, %vm279
        %v282 = vadd.s32 %v278, 16
        %v283 = vsel %vm281, %v282, %v278
        %vm284 = vcmp.eq.s32.totalorder %v283, 0
        %285 = vrot.lane.b32.xlu0 %v216, 1
        %v286 = vpop.permute.xlu0 %285
        %v287 = vsel %vm284, 0.0, %v286
        %v288 = vsub.f32 %v216, %v287
        %289 = vrot.lane.b32.xlu0 %v216, 16
        %v290 = vpop.permute.xlu0 %289
        %vm291 = vcmp.ge.s32.totalorder %v271, 16
        %v292 = vsub.f32 %v216, %v290
        %v293 = vsel %vm291, %v292, 0.0
        %v294 = vld [vmem:[#allocation2] sm:$0xf]
        %v295 = vsub.f32 %v216, %v294
        %v296 = vmul.f32 %v288, %v288
        %v297 = vsel %vm225, %v296, 0.0
        %298 = vadd.xlane.f32.xlu0 %v297
        %v299 = vpop.xlane.xlu0 %298
        %v300 = vrot.slane %v299, 4
        %v301 = vadd.f32 %v299, %v300
        %v302 = vrot.slane %v301, 2
        %v303 = vadd.f32 %v301, %v302
        %v304 = vrot.slane %v303, 1
        %v305 = vadd.f32 %v303, %v304
        %s306 = vtos %v305
        %v307 = vmul.f32 %v293, %v293
        %v308 = vsel %vm225, %v307, 0.0
        %309 = vadd.xlane.f32.xlu0 %v308
        %v310 = vpop.xlane.xlu0 %309
        %v311 = vrot.slane %v310, 4
        %v312 = vadd.f32 %v310, %v311
        %v313 = vrot.slane %v312, 2
        %v314 = vadd.f32 %v312, %v313
        %v315 = vrot.slane %v314, 1
        %v316 = vadd.f32 %v314, %v315
        %s317 = vtos %v316
        %s318 = sadd.f32 %s306, %s317
        %v319 = vmul.f32 %v295, %v295
        %vm320 = vcmask 125952
        %v321 = vsel %vm320, %v319, 0.0
        %322 = vadd.xlane.f32.xlu0 %v321
        %v323 = vpop.xlane.xlu0 %322
        %v324 = vrot.slane %v323, 4
        %v325 = vadd.f32 %v323, %v324
        %v326 = vrot.slane %v325, 2
        %v327 = vadd.f32 %v325, %v326
        %v328 = vrot.slane %v327, 1
        %v329 = vadd.f32 %v327, %v328
        %s330 = vtos %v329
        %s331 = sadd.f32 %s318, %s330
        %332 = vst.msk [vmem:[#allocation2] sm:$0xf] %vm320, %v290
        %v333 = vld [vmem:[%s215] sm:$0xff]
        %vm334 = vcmp.eq.s32.totalorder %v247, 0
        %v335 = vstv %s269
        %v336 = vstv %s331
        %v337 = vsel %vm334, %v335, %v336
        %v338 = vadd.f32 %v333, %v337
        %339 = vst [vmem:[%s215] sm:$0xff] %v338
        %s340 = sand.u32 %s98, 1
        %s341 = scalar_lea.sflag [#allocation5], %s340
        %s342 = sand.u32 %s98, 1
        %s343 = smul.addr %s342, 8
        %s344 = scalar_lea.vmem [#allocation8], %s343
        // Predicated region
        $region41: #{tpu_custom_call.1} parent=27 // pred_check
          %p345 = pneg %p108
        $region42: #{tpu_custom_call.1} parent=27 // pred_check_branch
          %347 = sbr.rel (%p345) target = $region44
        $region43: #{tpu_custom_call.1} parent=27 // pred_region
          %349 = vsyncadd %s341, 0
          %s350 = smul.addr %s26, 8
          %s351 = scalar_lea.hbm %s2, %s350
          %s353 = sshll.u32 %s344, 4
          %s354 = int_to_ptr.vmem [resolvable:$true] %s353
          %s355 = sshll.u32 %s351, 4
          %s356 = int_to_ptr.hbm [resolvable:$true] %s355
          %358 = dma.vmem_to_hbm [thread:$0]  %s354, 128, %s356, %s341
        $region44: #{tpu_custom_call.1} parent=27 // pred_fallthru
          _
      $region28: #{tpu_custom_call.1} parent=5 // pred_fallthru
        _
      %p359 = scmp.le.s32.totalorder 2, %s17
      // Predicated region
      $region45: #{tpu_custom_call.1} parent=5 // pred_check
        %p360 = pneg %p359
      $region46: #{tpu_custom_call.1} parent=5 // pred_check_branch
        %362 = sbr.rel (%p360) target = $region48
      $region47: #{tpu_custom_call.1} parent=5 // pred_region
        %s363 = ssub.s32 %s17, 2
        // Predicated region
        $region49: #{tpu_custom_call.1} parent=47 // pred_check
          %p364 = pneg %p114
        $region50: #{tpu_custom_call.1} parent=47 // pred_check_branch
          %366 = sbr.rel (%p364) target = $region52
        $region51: #{tpu_custom_call.1} parent=47 // pred_region
          %s367 = sand.u32 %s99, 1
          %s368 = scalar_lea.sflag [#allocation5], %s367
          %s369 = sand.u32 %s99, 1
          %s370 = smul.addr %s369, 8
          %s371 = scalar_lea.vmem [#allocation8], %s370
          %373 = dma.done %s368, 128
        $region52: #{tpu_custom_call.1} parent=47 // pred_fallthru
          _
      $region48: #{tpu_custom_call.1} parent=5 // pred_fallthru
        _
    $region6: #{tpu_custom_call.1} parent=1 // loop_footer
      %s21 = sadd.s32 1, %s17
    $region7: #{tpu_custom_call.1} parent=1 // loop_footer_branch
      %16 = sbr.rel target = $region3
    $region8: #{tpu_custom_call.1} parent=1 // loop_exit
      _
    %374 = vsyncpa [#allocation4], 1
    %s375 = scalar_lea.sflag [#allocation4], 1
    %376 = vsyncpa %s375, 1
    %377 = vsyncpa [#allocation7], 1
    %s378 = scalar_lea.sflag [#allocation7], 1
    %379 = vsyncpa %s378, 1
    %380 = vsyncpa [#allocation5], 1
    %s381 = scalar_lea.sflag [#allocation5], 1
    %382 = vsyncpa %s381, 1

</llo_original>
